<compile_context>
chip_gen: v7x
topology: tpu7x:2x2x1
jax: 0.10.0
libtpu: 0.0.40
codegen_flags: <defaults>
</compile_context>

<pallas_src>
import jax
import jax.numpy as jnp
from jax.experimental import pallas as pl
from jax.experimental.pallas import tpu as pltpu


def _emb_net_kernel(ids_ref, tab_ref, w1_ref, b1_ref, w2_ref, b2_ref, o_ref):
    # ids_ref : (1, T)  int32   token ids for this tile (lane-major)
    # tab_ref : (V, E)  f32     embedding table (resident)
    # w1_ref  : (E, U)  f32     linear weight, (in, out) layout (resident)
    # b1_ref  : (1, U)  f32
    # w2_ref  : (1, U)  f32     out-layer weight as a row
    # b2_ref  : (1, 1)  f32     SMEM scalar
    # o_ref   : (1, T)  f32     lane-dense output row
    V = tab_ref.shape[0]
    T = ids_ref.shape[1]

    # ---- Stage 1: per-id LUT, O(V*(E+U)) work, independent of token count ----
    # lut[v] = out(relu(linear(relu(emb_table[v]))))  -- the exact module math
    # applied to every vocabulary row once.
    e = jnp.maximum(tab_ref[...], 0.0)                              # relu(embedding)   (V, E)
    h = jnp.dot(e, w1_ref[...], preferred_element_type=jnp.float32) + b1_ref[...]
    h = jnp.maximum(h, 0.0)                                         # relu(linear)      (V, U)
    lut = (jnp.sum(h * w2_ref[...], axis=1, keepdims=True)
           + b2_ref[0, 0])                                          # out layer         (V, 1)

    # ---- Stage 2: per-token gather out[t] = lut[ids[t]] (VPU compare+select,
    #      XLU sublane reduce; no MXU pass, no f32 one-hot materialized) ----
    ids = ids_ref[...]                                              # (1, T)
    vocab_iota = jax.lax.broadcasted_iota(jnp.int32, (V, T), 0)     # (V, T)
    sel = jnp.where(vocab_iota == ids, lut, 0.0)                    # lut lane-broadcast
    o_ref[...] = jnp.sum(sel, axis=0, keepdims=True)                # (1, T) lane-dense


def embedding_network_forward(x_idx, emb_table, w1, b1, w2, b2, *, max_tile=8192):
    """Pallas equivalent of EmbeddingNetwork.forward.

    x_idx     : int (batch, seq) token ids (clamped to [0, V-1])
    emb_table : (no_embedding, emb_dim) fp32
    w1, b1    : (emb_dim, units), (units,)      -- self.linear  (in, out layout)
    w2, b2    : (units, 1), (1,)                -- self.out
    returns   : (batch, seq, 1) fp32
    """
    assert max_tile % 128 == 0, "max_tile must be a multiple of 128 lanes"
    B, S = x_idx.shape
    n_tok = B * S
    V, E = emb_table.shape
    U = w1.shape[1]

    def rup(x, m):
        return ((x + m - 1) // m) * m

    # Token-axis tiling: multiple of 128 lanes, capped at max_tile, and at
    # least 2 grid steps whenever there is more than one 128-token chunk so
    # the "parallel" grid axis can be sharded across v7x's two TensorCores.
    n128 = rup(n_tok, 128)
    steps = max(1, (n128 + max_tile - 1) // max_tile)
    if steps == 1 and n128 > 128:
        steps = 2
    tile = rup((n_tok + steps - 1) // steps, 128)
    n_pad = tile * steps

    # Clamp ids (out-of-range ids behave like jnp.take clamping; PyTorch would
    # raise).  Padding tokens use id 0 and are sliced off after the call.
    ids = jnp.clip(x_idx.reshape(-1).astype(jnp.int32), 0, V - 1)
    ids = jnp.pad(ids, (0, n_pad - n_tok)).reshape(1, n_pad)

    tab = emb_table.astype(jnp.float32)                 # (V, E)   resident
    w1f = w1.astype(jnp.float32)                        # (E, U)   resident
    b1r = b1.reshape(1, U).astype(jnp.float32)          # (1, U)   resident
    w2r = w2.reshape(1, U).astype(jnp.float32)          # (1, U)   resident
    b2s = b2.reshape(1, 1).astype(jnp.float32)          # (1, 1) -> SMEM

    # VMEM budget from the actual footprint (review: don't use a flat 48 MiB):
    #   ~4x the (V, tile) compare/select slab (iota / mask / select temps),
    #   double-buffered ids + out, resident params, plus fixed headroom.
    sel_slab = V * tile * 4
    io_bytes = 2 * 2 * tile * 4
    par_bytes = (V * E + E * U + V * U + 2 * U + 1) * 4
    vmem_limit = 4 * sel_slab + io_bytes + par_bytes + (8 << 20)
    vmem_limit = max(16 << 20, min(vmem_limit, 40 << 20))

    grid = (n_pad // tile,)

    out = pl.pallas_call(
        _emb_net_kernel,
        out_shape=jax.ShapeDtypeStruct((1, n_pad), jnp.float32),
        grid=grid,
        in_specs=[
            pl.BlockSpec((1, tile), lambda i: (0, i)),          # ids: streamed per tile
            pl.BlockSpec((V, E), lambda i: (0, 0)),             # table: resident
            pl.BlockSpec((E, U), lambda i: (0, 0)),             # w1: resident
            pl.BlockSpec((1, U), lambda i: (0, 0)),             # b1 row: resident
            pl.BlockSpec((1, U), lambda i: (0, 0)),             # w2 row: resident
            pl.BlockSpec(memory_space=pltpu.MemorySpace.SMEM),  # b2 scalar
        ],
        out_specs=pl.BlockSpec((1, tile), lambda i: (0, i)),
        compiler_params=pltpu.CompilerParams(
            dimension_semantics=("parallel",),                  # megacore sharding on v7x
            vmem_limit_bytes=vmem_limit,
        ),
    )(ids, tab, w1f, b1r, w2r, b2s)

    return out[0, :n_tok].reshape(B, S, 1)


if __name__ == "__main__":
    # Module hyper-parameters (small, consistent with the forward).
    units = 32
    no_embedding = 64
    emb_dim = 32
    batch, seq = 2, 8

    key = jax.random.PRNGKey(0)
    k_idx, k_emb, k_w1, k_b1, k_w2, k_b2 = jax.random.split(key, 6)

    # Deterministic synthetic parameters (shapes from __init__).
    emb_table = jax.random.normal(k_emb, (no_embedding, emb_dim), jnp.float32) * 0.1
    w1 = jax.random.normal(k_w1, (emb_dim, units), jnp.float32) * 0.1   # linear weight (in, out)
    b1 = jax.random.normal(k_b1, (units,), jnp.float32) * 0.1
    w2 = jax.random.normal(k_w2, (units, 1), jnp.float32) * 0.1         # out weight (in, out)
    b2 = jax.random.normal(k_b2, (1,), jnp.float32) * 0.1

    # Integer token ids.
    x = jax.random.randint(k_idx, (batch, seq), 0, no_embedding, dtype=jnp.int32)

    y = embedding_network_forward(x, emb_table, w1, b1, w2, b2)
    jax.block_until_ready(y)

    # Reference check in plain JAX (same math as the PyTorch forward).
    ref = jnp.take(emb_table, x, axis=0)
    ref = jnp.maximum(ref, 0.0)
    ref = jnp.maximum(ref @ w1 + b1, 0.0)
    ref = ref @ w2 + b2
    assert y.shape == (batch, seq, 1), y.shape
    assert jnp.allclose(y, ref, atol=1e-5, rtol=1e-5), "mismatch vs reference"

    print("KERNEL_OK")
</pallas_src>

<mosaic_0001>
module attributes {stable_mosaic.version = 11 : i64} {
  func.func @_emb_net_kernel(%arg0: i32, %arg1: memref<1x128xi32, #tpu.memory_space<vmem>>, %arg2: memref<64x32xf32, #tpu.memory_space<vmem>>, %arg3: memref<32x32xf32, #tpu.memory_space<vmem>>, %arg4: memref<1x32xf32, #tpu.memory_space<vmem>>, %arg5: memref<1x32xf32, #tpu.memory_space<vmem>>, %arg6: memref<1x1xf32, #tpu.memory_space<smem>>, %arg7: memref<1x128xf32, #tpu.memory_space<vmem>>) attributes {dimension_semantics = [#tpu.dimension_semantics<parallel>], iteration_bounds = array<i64: 1>, scalar_prefetch = 0 : i64, scratch_operands = 0 : i64, tpu.core_type = #tpu.core_type<tc>, window_params = [{transform_indices = @transform_0, window_bounds = array<i64: 1, 128>}, {pipeline_mode = #tpu.pipeline_mode<synchronous>, transform_indices = @transform_1, window_bounds = array<i64: 64, 32>}, {pipeline_mode = #tpu.pipeline_mode<synchronous>, transform_indices = @transform_2, window_bounds = array<i64: 32, 32>}, {pipeline_mode = #tpu.pipeline_mode<synchronous>, transform_indices = @transform_3, window_bounds = array<i64: 1, 32>}, {pipeline_mode = #tpu.pipeline_mode<synchronous>, transform_indices = @transform_4, window_bounds = array<i64: 1, 32>}, {transform_indices = @transform_5, window_bounds = array<i64: 1, 1>}, {transform_indices = @transform_6, window_bounds = array<i64: 1, 128>}]} {
    %c0 = arith.constant 0 : index
    %c0_0 = arith.constant 0 : index
    %0 = vector.load %arg2[%c0, %c0_0] : memref<64x32xf32, #tpu.memory_space<vmem>>, vector<64x32xf32>
    %cst = arith.constant 0.000000e+00 : f32
    %1 = vector.broadcast %cst : f32 to vector<64x32xf32>
    %2 = arith.maximumf %0, %1 : vector<64x32xf32>
    %c0_1 = arith.constant 0 : index
    %c0_2 = arith.constant 0 : index
    %3 = vector.load %arg3[%c0_1, %c0_2] : memref<32x32xf32, #tpu.memory_space<vmem>>, vector<32x32xf32>
    %cst_3 = arith.constant dense<0.000000e+00> : vector<64x32xf32>
    %4 = tpu.matmul %2, %3, %cst_3 {dimension_numbers = #tpu.dot_dimension_numbers<[1], [0], [0], [1], [0, 0, 1, 1], [], []>} : vector<64x32xf32>, vector<32x32xf32>, vector<64x32xf32> -> vector<64x32xf32>
    %c0_4 = arith.constant 0 : index
    %c0_5 = arith.constant 0 : index
    %5 = vector.load %arg4[%c0_4, %c0_5] : memref<1x32xf32, #tpu.memory_space<vmem>>, vector<1x32xf32>
    %6 = vector.broadcast %5 : vector<1x32xf32> to vector<64x32xf32>
    %7 = arith.addf %4, %6 : vector<64x32xf32>
    %cst_6 = arith.constant 0.000000e+00 : f32
    %8 = vector.broadcast %cst_6 : f32 to vector<64x32xf32>
    %9 = arith.maximumf %7, %8 : vector<64x32xf32>
    %c0_7 = arith.constant 0 : index
    %c0_8 = arith.constant 0 : index
    %10 = vector.load %arg5[%c0_7, %c0_8] : memref<1x32xf32, #tpu.memory_space<vmem>>, vector<1x32xf32>
    %11 = vector.broadcast %10 : vector<1x32xf32> to vector<64x32xf32>
    %12 = arith.mulf %9, %11 : vector<64x32xf32>
    %cst_9 = arith.constant dense<0.000000e+00> : vector<64xf32>
    %13 = vector.multi_reduction <add>, %12, %cst_9 [1] : vector<64x32xf32> to vector<64xf32>
    %14 = vector.shape_cast %13 : vector<64xf32> to vector<64x1xf32>
    %c0_10 = arith.constant 0 : index
    %c0_11 = arith.constant 0 : index
    %15 = memref.load %arg6[%c0_10, %c0_11] : memref<1x1xf32, #tpu.memory_space<smem>>
    %16 = vector.broadcast %15 : f32 to vector<64x1xf32>
    %17 = arith.addf %14, %16 : vector<64x1xf32>
    %c0_12 = arith.constant 0 : index
    %c0_13 = arith.constant 0 : index
    %18 = vector.load %arg1[%c0_12, %c0_13] : memref<1x128xi32, #tpu.memory_space<vmem>>, vector<1x128xi32>
    %19 = tpu.iota {dimensions = array<i32: 0>} : vector<64x128xi32>
    %20 = vector.broadcast %18 : vector<1x128xi32> to vector<64x128xi32>
    %21 = arith.cmpi eq, %19, %20 : vector<64x128xi32>
    %cst_14 = arith.constant 0.000000e+00 : f32
    %22 = vector.shape_cast %17 : vector<64x1xf32> to vector<64x1xf32>
    %23 = vector.broadcast %22 : vector<64x1xf32> to vector<64x128xf32>
    %24 = vector.broadcast %cst_14 : f32 to vector<64x128xf32>
    %25 = arith.select %21, %23, %24 : vector<64x128xi1>, vector<64x128xf32>
    %cst_15 = arith.constant dense<0.000000e+00> : vector<128xf32>
    %26 = vector.multi_reduction <add>, %25, %cst_15 [0] : vector<64x128xf32> to vector<128xf32>
    %27 = vector.shape_cast %26 : vector<128xf32> to vector<1x128xf32>
    %c0_16 = arith.constant 0 : index
    %c0_17 = arith.constant 0 : index
    %28 = vector.load %arg7[%c0_16, %c0_17] : memref<1x128xf32, #tpu.memory_space<vmem>>, vector<1x128xf32>
    tpu.vector_store %arg7[%c0_16, %c0_17], %27 {strides = array<i32>} : memref<1x128xf32, #tpu.memory_space<vmem>>, vector<1x128xf32>,
    return
  }
  func.func @transform_0(%arg0: i32) -> (i32, i32) {
    %c0_i32 = arith.constant 0 : i32
    %c0_i32_0 = arith.constant 0 : i32
    return %c0_i32, %arg0 : i32, i32
  }
  func.func @transform_1(%arg0: i32) -> (i32, i32) {
    %c0_i32 = arith.constant 0 : i32
    %c0_i32_0 = arith.constant 0 : i32
    %c0_i32_1 = arith.constant 0 : i32
    return %c0_i32, %c0_i32_0 : i32, i32
  }
  func.func @transform_2(%arg0: i32) -> (i32, i32) {
    %c0_i32 = arith.constant 0 : i32
    %c0_i32_0 = arith.constant 0 : i32
    %c0_i32_1 = arith.constant 0 : i32
    return %c0_i32, %c0_i32_0 : i32, i32
  }
  func.func @transform_3(%arg0: i32) -> (i32, i32) {
    %c0_i32 = arith.constant 0 : i32
    %c0_i32_0 = arith.constant 0 : i32
    %c0_i32_1 = arith.constant 0 : i32
    return %c0_i32, %c0_i32_0 : i32, i32
  }
  func.func @transform_4(%arg0: i32) -> (i32, i32) {
    %c0_i32 = arith.constant 0 : i32
    %c0_i32_0 = arith.constant 0 : i32
    %c0_i32_1 = arith.constant 0 : i32
    return %c0_i32, %c0_i32_0 : i32, i32
  }
  func.func @transform_5(%arg0: i32) -> (i32, i32) {
    %c0_i32 = arith.constant 0 : i32
    %c0_i32_0 = arith.constant 0 : i32
    %c0_i32_1 = arith.constant 0 : i32
    return %c0_i32, %c0_i32_0 : i32, i32
  }
  func.func @transform_6(%arg0: i32) -> (i32, i32) {
    %c0_i32 = arith.constant 0 : i32
    %c0_i32_0 = arith.constant 0 : i32
    return %c0_i32, %arg0 : i32, i32
  }
}

</mosaic_0001>

<llo_original>
// kernel: tpu_custom_call.1
$region0: #{tpu_custom_call.1}
  #allocation0 [shape = 'u32[]', space=smem, size = 0x4, offset = 0x4, fixed_abs, tag = 'smem constant byte address 0x4 - core index']
  #allocation1 [shape = 'u32[144,128]{1,0:T(1,128)}', space=vmem, size = 0x12000, scoped, tag = 'internal scratch']
  #allocation2 [shape = 'f32[1,1]{1,0:T(1,128)S(6)}', space=smem, size = 0x200, scoped, tag = 'scoped memory for tpu_custom_call.1']
  %s0 = inlined_call_operand.vmem [shape: s32[1,128], index: 0, kind: input, shape index: {}]
  %s1 = inlined_call_operand.vmem [shape: f32[64,32], index: 1, kind: input, shape index: {}]
  %s2 = inlined_call_operand.vmem [shape: f32[32,32], index: 2, kind: input, shape index: {}]
  %s3 = inlined_call_operand.vmem [shape: f32[1,32], index: 3, kind: input, shape index: {}]
  %s4 = inlined_call_operand.vmem [shape: f32[1,32], index: 4, kind: input, shape index: {}]
  %s5 = inlined_call_operand.<no memory space> [shape: f32[1,1], index: 5, kind: input, shape index: {}]
  %s6 = inlined_call_operand.hbm [shape: f32[1,128], index: 6, kind: output, shape index: {}]
  %s7 = sld [smem:[#allocation0]]
  $region34: #{tpu_custom_call.1} parent=0
    _
  %s9 = ssub.s32 1, %s7
  %s10 = scalar_select 0, %s9, %s7
  %11 = sst [smem:[#allocation2]] %s5
  $region1: #{tpu_custom_call.1} parent=0
    #allocation3 [shape = 'u8[512]{0}', space=vmem, size = 0x400, scoped, tag = 'output window, operand 0, single buffered']
    #allocation4 [shape = 's32[1]{0}', space=sflag, size = 0x4, scoped, tag = 'scoped memory for tpu_custom_call.1']
    %12 = vsyncpa [#allocation4], 0
    // Predicated region
    $region2: #{tpu_custom_call.1} parent=1 // pred_check
      _
    $region3: #{tpu_custom_call.1} parent=1 // pred_check_branch
      %14 = sbr.rel (0) target = $region5
    $region4: #{tpu_custom_call.1} parent=1 // pred_region
      _
    $region5: #{tpu_custom_call.1} parent=1 // pred_fallthru
      _
    // Predicated region
    $region6: #{tpu_custom_call.1} parent=1 // pred_check
      _
    $region7: #{tpu_custom_call.1} parent=1 // pred_check_branch
      %16 = sbr.rel (0) target = $region9
    $region8: #{tpu_custom_call.1} parent=1 // pred_region
      _
    $region9: #{tpu_custom_call.1} parent=1 // pred_fallthru
      _
    // Predicated region
    $region10: #{tpu_custom_call.1} parent=1 // pred_check
      _
    $region11: #{tpu_custom_call.1} parent=1 // pred_check_branch
      %18 = sbr.rel (0) target = $region13
    $region12: #{tpu_custom_call.1} parent=1 // pred_region
      _
    $region13: #{tpu_custom_call.1} parent=1 // pred_fallthru
      _
    // Predicated region
    $region14: #{tpu_custom_call.1} parent=1 // pred_check
      _
    $region15: #{tpu_custom_call.1} parent=1 // pred_check_branch
      %20 = sbr.rel (0) target = $region17
    $region16: #{tpu_custom_call.1} parent=1 // pred_region
      _
    $region17: #{tpu_custom_call.1} parent=1 // pred_fallthru
      _
    // Predicated region
    $region18: #{tpu_custom_call.1} parent=1 // pred_check
      _
    $region19: #{tpu_custom_call.1} parent=1 // pred_check_branch
      %22 = sbr.rel (0) target = $region21
    $region20: #{tpu_custom_call.1} parent=1 // pred_region
      _
    $region21: #{tpu_custom_call.1} parent=1 // pred_fallthru
      _
    // Predicated region
    $region22: #{tpu_custom_call.1} parent=1 // pred_check
      _
    $region23: #{tpu_custom_call.1} parent=1 // pred_check_branch
      %24 = sbr.rel (0) target = $region25
    $region24: #{tpu_custom_call.1} parent=1 // pred_region
      _
    $region25: #{tpu_custom_call.1} parent=1 // pred_fallthru
      _
    %v25 = vld [vmem:[%s1] sm:$0xff]
    %v26 = vld [vmem:[%s1 + $0x8] sm:$0xff]
    %v27 = vld [vmem:[%s1 + $0x10] sm:$0xff]
    %v28 = vld [vmem:[%s1 + $0x18] sm:$0xff]
    %v29 = vld [vmem:[%s1 + $0x20] sm:$0xff]
    %v30 = vld [vmem:[%s1 + $0x28] sm:$0xff]
    %v31 = vld [vmem:[%s1 + $0x30] sm:$0xff]
    %v32 = vld [vmem:[%s1 + $0x38] sm:$0xff]
    %v33 = vmax.f32 %v25, 0.0
    %v34 = vmax.f32 %v26, 0.0
    %v35 = vmax.f32 %v27, 0.0
    %v36 = vmax.f32 %v28, 0.0
    %v37 = vmax.f32 %v29, 0.0
    %v38 = vmax.f32 %v30, 0.0
    %v39 = vmax.f32 %v31, 0.0
    %v40 = vmax.f32 %v32, 0.0
    %v41 = vld [vmem:[%s2] sm:$0xff]
    %v42 = vld [vmem:[%s2 + $0x8] sm:$0xff]
    %v43 = vld [vmem:[%s2 + $0x10] sm:$0xff]
    %v44 = vld [vmem:[%s2 + $0x18] sm:$0xff]
    %v45 = vld [vmem:[%s3] sm:$0x1]
    %v47 = vlaneseq
    %v48 = vshrl.u32 %v47, 7
    %v49 = vsub.s32 0, %v48
    %v50 = vrot.slane %v45, %v49
    %vm52 = vcmask 261120
    %v54 = vsel %vm52, %v33, 0
    %v57 = vsel %vm52, %v34, 0
    %v60 = vsel %vm52, %v35, 0
    %v63 = vsel %vm52, %v36, 0
    %v66 = vsel %vm52, %v37, 0
    %v69 = vsel %vm52, %v38, 0
    %v72 = vsel %vm52, %v39, 0
    %v75 = vsel %vm52, %v40, 0
    %77 = vmatprep.subr.mxu0 0.0
    %78 = vmatpush1.msra.mxu0 %v41
    %79 = vmatprep.subr.mxu0 0.0
    %80 = vmatpush1.msra.mxu0 %v42
    %81 = vmatprep.subr.mxu0 0.0
    %82 = vmatpush1.msra.mxu0 %v43
    %83 = vmatprep.subr.mxu0 0.0
    %84 = vmatpush1.msra.mxu0 %v44
    %85 = vmatprep.subr.mxu0 0.0
    %86 = vmatpush1.msra.mxu0 0.0
    %87 = vmatprep.subr.mxu0 0.0
    %88 = vmatpush1.msra.mxu0 0.0
    %89 = vmatprep.subr.mxu0 0.0
    %90 = vmatpush1.msra.mxu0 0.0
    %91 = vmatprep.subr.mxu0 0.0
    %92 = vmatpush1.msra.mxu0 0.0
    %93 = vmatprep.subr.mxu0 0.0
    %94 = vmatpush1.msra.mxu0 0.0
    %95 = vmatprep.subr.mxu0 0.0
    %96 = vmatpush1.msra.mxu0 0.0
    %97 = vmatprep.subr.mxu0 0.0
    %98 = vmatpush1.msra.mxu0 0.0
    %99 = vmatprep.subr.mxu0 0.0
    %100 = vmatpush1.msra.mxu0 0.0
    %101 = vmatprep.subr.mxu0 0.0
    %102 = vmatpush1.msra.mxu0 0.0
    %103 = vmatprep.subr.mxu0 0.0
    %104 = vmatpush1.msra.mxu0 0.0
    %105 = vmatprep.subr.mxu0 0.0
    %106 = vmatpush1.msra.mxu0 0.0
    %107 = vmatprep.subr.mxu0 0.0
    %108 = vmatpush1.msra.mxu0 0.0
    %109 = vmatprep.subr.mxu0 0.0
    %110 = vmatpush1.msra.mxu0 0.0
    %111 = vmatprep.subr.mxu0 0.0
    %112 = vmatpush1.msra.mxu0 0.0
    %113 = vmatprep.subr.mxu0 0.0
    %114 = vmatpush1.msra.mxu0 0.0
    %115 = vmatprep.subr.mxu0 0.0
    %116 = vmatpush1.msra.mxu0 0.0
    %117 = vmatprep.subr.mxu0 0.0
    %118 = vmatpush1.msra.mxu0 0.0
    %119 = vmatprep.subr.mxu0 0.0
    %120 = vmatpush1.msra.mxu0 0.0
    %121 = vmatprep.subr.mxu0 0.0
    %122 = vmatpush1.msra.mxu0 0.0
    %123 = vmatprep.subr.mxu0 0.0
    %124 = vmatpush1.msra.mxu0 0.0
    %125 = vmatprep.subr.mxu0 0.0
    %126 = vmatpush1.msra.mxu0 0.0
    %127 = vmatprep.subr.mxu0 0.0
    %128 = vmatpush1.msra.mxu0 0.0
    %129 = vmatprep.subr.mxu0 0.0
    %130 = vmatpush1.msra.mxu0 0.0
    %131 = vmatprep.subr.mxu0 0.0
    %132 = vmatpush1.msra.mxu0 0.0
    %133 = vmatprep.subr.mxu0 0.0
    %134 = vmatpush1.msra.mxu0 0.0
    %135 = vmatprep.subr.mxu0 0.0
    %136 = vmatpush1.msra.mxu0 0.0
    %137 = vmatprep.subr.mxu0 0.0
    %138 = vmatpush1.msra.mxu0 0.0
    %139 = vmatprep.subr.mxu0 0.0
    %140 = vmatpush1.msra.mxu0 0.0
    %141 = vmatprep.mubr.f32.mxu0 0.0
    %142 = vmatmul.mubr.f32.gmra.mrb[0].mxu0 %v54
    %v143 = vpop.f32.mrb[0].mxu0
    %v144 = vadd.f32 %v50, %v143
    %v145 = vpop.f32.mrb[0].mxu0
    %146 = vmatprep.mubr.f32.mxu0 0.0
    %147 = vmatmul.mubr.f32.gmra.mrb[0].mxu0 %v57
    %v148 = vpop.f32.mrb[0].mxu0
    %v149 = vadd.f32 %v50, %v148
    %v150 = vpop.f32.mrb[0].mxu0
    %151 = vmatprep.mubr.f32.mxu0 0.0
    %152 = vmatmul.mubr.f32.gmra.mrb[0].mxu0 %v60
    %v153 = vpop.f32.mrb[0].mxu0
    %v154 = vadd.f32 %v50, %v153
    %v155 = vpop.f32.mrb[0].mxu0
    %156 = vmatprep.mubr.f32.mxu0 0.0
    %157 = vmatmul.mubr.f32.gmra.mrb[0].mxu0 %v63
    %v158 = vpop.f32.mrb[0].mxu0
    %v159 = vadd.f32 %v50, %v158
    %v160 = vpop.f32.mrb[0].mxu0
    %161 = vmatprep.mubr.f32.mxu0 0.0
    %162 = vmatmul.mubr.f32.gmra.mrb[0].mxu0 %v66
    %v163 = vpop.f32.mrb[0].mxu0
    %v164 = vadd.f32 %v50, %v163
    %v165 = vpop.f32.mrb[0].mxu0
    %166 = vmatprep.mubr.f32.mxu0 0.0
    %167 = vmatmul.mubr.f32.gmra.mrb[0].mxu0 %v69
    %v168 = vpop.f32.mrb[0].mxu0
    %v169 = vadd.f32 %v50, %v168
    %v170 = vpop.f32.mrb[0].mxu0
    %171 = vmatprep.mubr.f32.mxu0 0.0
    %172 = vmatmul.mubr.f32.gmra.mrb[0].mxu0 %v72
    %v173 = vpop.f32.mrb[0].mxu0
    %v174 = vadd.f32 %v50, %v173
    %v175 = vpop.f32.mrb[0].mxu0
    %176 = vmatprep.mubr.f32.mxu0 0.0
    %177 = vmatmul.mubr.f32.gmra.mrb[0].mxu0 %v75
    %v178 = vpop.f32.mrb[0].mxu0
    %v179 = vadd.f32 %v50, %v178
    %v180 = vpop.f32.mrb[0].mxu0
    %181 = vdwg.mxu0
    %v182 = vmax.f32 %v144, 0.0
    %v183 = vmax.f32 %v149, 0.0
    %v184 = vmax.f32 %v154, 0.0
    %v185 = vmax.f32 %v159, 0.0
    %v186 = vmax.f32 %v164, 0.0
    %v187 = vmax.f32 %v169, 0.0
    %v188 = vmax.f32 %v174, 0.0
    %v189 = vmax.f32 %v179, 0.0
    %v190 = vld [vmem:[%s4] sm:$0x1]
    %v192 = vlaneseq
    %v193 = vshrl.u32 %v192, 7
    %v194 = vsub.s32 0, %v193
    %v195 = vrot.slane %v190, %v194
    %v197 = vmul.f32 %v182, %v195
    %v198 = vmul.f32 %v183, %v195
    %v199 = vmul.f32 %v184, %v195
    %v200 = vmul.f32 %v185, %v195
    %v201 = vmul.f32 %v186, %v195
    %v202 = vmul.f32 %v187, %v195
    %v203 = vmul.f32 %v188, %v195
    %v204 = vmul.f32 %v189, %v195
    %v205 = vsel %vm52, %v197, 0.0
    %206 = vadd.xlane.f32.xlu0 %v205
    %v207 = vpop.xlane.xlu0 %206
    %v208 = vsel %vm52, %v198, 0.0
    %209 = vadd.xlane.f32.xlu0 %v208
    %v210 = vpop.xlane.xlu0 %209
    %v211 = vsel %vm52, %v199, 0.0
    %212 = vadd.xlane.f32.xlu0 %v211
    %v213 = vpop.xlane.xlu0 %212
    %v214 = vsel %vm52, %v200, 0.0
    %215 = vadd.xlane.f32.xlu0 %v214
    %v216 = vpop.xlane.xlu0 %215
    %v217 = vsel %vm52, %v201, 0.0
    %218 = vadd.xlane.f32.xlu0 %v217
    %v219 = vpop.xlane.xlu0 %218
    %v220 = vsel %vm52, %v202, 0.0
    %221 = vadd.xlane.f32.xlu0 %v220
    %v222 = vpop.xlane.xlu0 %221
    %v223 = vsel %vm52, %v203, 0.0
    %224 = vadd.xlane.f32.xlu0 %v223
    %v225 = vpop.xlane.xlu0 %224
    %v226 = vsel %vm52, %v204, 0.0
    %227 = vadd.xlane.f32.xlu0 %v226
    %v228 = vpop.xlane.xlu0 %227
    %s229 = sld [smem:[#allocation2]]
    %v230 = vstv %s229
    %v231 = vadd.f32 %v207, %v230
    %v232 = vadd.f32 %v210, %v230
    %v233 = vadd.f32 %v213, %v230
    %v234 = vadd.f32 %v216, %v230
    %v235 = vadd.f32 %v219, %v230
    %v236 = vadd.f32 %v222, %v230
    %v237 = vadd.f32 %v225, %v230
    %v238 = vadd.f32 %v228, %v230
    %v239 = vld [vmem:[%s0] sm:$0x1]
    %v240 = vlaneseq
    %v241 = vshrl.u32 %v240, 7
    %v242 = vadd.s32 %v241, 8
    %v243 = vadd.s32 %v241, 16
    %v244 = vadd.s32 %v241, 24
    %v245 = vadd.s32 %v241, 32
    %v246 = vadd.s32 %v241, 40
    %v247 = vadd.s32 %v241, 48
    %v248 = vadd.s32 %v241, 56
    %v249 = vlaneseq
    %v250 = vshrl.u32 %v249, 7
    %v251 = vsub.s32 0, %v250
    %v252 = vrot.slane %v239, %v251
    %vm253 = vcmp.eq.s32.totalorder %v241, %v252
    %vm254 = vcmp.eq.s32.totalorder %v242, %v252
    %vm255 = vcmp.eq.s32.totalorder %v243, %v252
    %vm256 = vcmp.eq.s32.totalorder %v244, %v252
    %vm257 = vcmp.eq.s32.totalorder %v245, %v252
    %vm258 = vcmp.eq.s32.totalorder %v246, %v252
    %vm259 = vcmp.eq.s32.totalorder %v247, %v252
    %vm260 = vcmp.eq.s32.totalorder %v248, %v252
    %v261 = vsel %vm253, %v231, 0.0
    %v262 = vsel %vm254, %v232, 0.0
    %v263 = vsel %vm255, %v233, 0.0
    %v264 = vsel %vm256, %v234, 0.0
    %v265 = vsel %vm257, %v235, 0.0
    %v266 = vsel %vm258, %v236, 0.0
    %v267 = vsel %vm259, %v237, 0.0
    %v268 = vsel %vm260, %v238, 0.0
    %v269 = vadd.f32 %v261, %v262
    %v270 = vadd.f32 %v269, %v263
    %v271 = vadd.f32 %v270, %v264
    %v272 = vadd.f32 %v271, %v265
    %v273 = vadd.f32 %v272, %v266
    %v274 = vadd.f32 %v273, %v267
    %v275 = vadd.f32 %v274, %v268
    %v276 = vrot.slane %v275, 4
    %v277 = vadd.f32 %v275, %v276
    %v278 = vrot.slane %v277, 2
    %v279 = vadd.f32 %v277, %v278
    %v280 = vrot.slane %v279, 1
    %v281 = vadd.f32 %v279, %v280
    %282 = vst [vmem:[#allocation3] sm:$0x1] %v281
    // Predicated region
    $region26: #{tpu_custom_call.1} parent=1 // pred_check
      _
    $region27: #{tpu_custom_call.1} parent=1 // pred_check_branch
      %284 = sbr.rel (0) target = $region29
    $region28: #{tpu_custom_call.1} parent=1 // pred_region
      %s286 = ssub.s32 16, 16
      %287 = vsyncadd [#allocation4], %s286
      %s289 = sshll.u32 [#allocation3], 4
      %s290 = int_to_ptr.vmem [resolvable:$true] %s289
      %292 = dma.vmem_to_hbm [thread:$0]  %s290, 16, %s6, [#allocation4]
    $region29: #{tpu_custom_call.1} parent=1 // pred_fallthru
      _
    // Predicated region
    $region30: #{tpu_custom_call.1} parent=1 // pred_check
      _
    $region31: #{tpu_custom_call.1} parent=1 // pred_check_branch
      %294 = sbr.rel (0) target = $region33
    $region32: #{tpu_custom_call.1} parent=1 // pred_region
      %295 = dma.done [#allocation4], 16
    $region33: #{tpu_custom_call.1} parent=1 // pred_fallthru
      _
    %296 = vsyncpa [#allocation4], 1

</llo_original>
